<compile_context>
chip_gen: v6e
topology: v6e:2x2x1
jax: 0.10.0
libtpu: 0.0.40
codegen_flags: <defaults>
</compile_context>

<pallas_src>
import functools
import numpy as np

import jax
import jax.numpy as jnp
from jax.experimental import pallas as pl
from jax.experimental.pallas import tpu as pltpu


# --------------------------------------------------------------------------
# sin-cos positional embeddings (host-side numpy — matches reference code)
# --------------------------------------------------------------------------
def get_1d_sincos_pos_embed_from_grid(embed_dim, pos):
    assert embed_dim % 2 == 0
    omega = np.arange(embed_dim // 2, dtype=np.float64)
    omega /= embed_dim / 2.0
    omega = 1.0 / 10000 ** omega
    pos = pos.reshape(-1)
    out = np.einsum('m,d->md', pos, omega)
    return np.concatenate([np.sin(out), np.cos(out)], axis=1)


def get_2d_sincos_pos_embed_from_grid(embed_dim, grid):
    assert embed_dim % 2 == 0
    emb_h = get_1d_sincos_pos_embed_from_grid(embed_dim // 2, grid[0])
    emb_w = get_1d_sincos_pos_embed_from_grid(embed_dim // 2, grid[1])
    return np.concatenate([emb_h, emb_w], axis=1)


def get_2d_sincos_pos_embed(embed_dim, grid_size, cls_token=False):
    grid_h = np.arange(grid_size, dtype=np.float32)
    grid_w = np.arange(grid_size, dtype=np.float32)
    grid = np.meshgrid(grid_w, grid_h)
    grid = np.stack(grid, axis=0).reshape([2, 1, grid_size, grid_size])
    pos_embed = get_2d_sincos_pos_embed_from_grid(embed_dim, grid)
    if cls_token:
        pos_embed = np.concatenate([np.zeros([1, embed_dim]), pos_embed], axis=0)
    return pos_embed.astype(np.float32)


# --------------------------------------------------------------------------
# helpers / budgets
# --------------------------------------------------------------------------
_VMEM_LIMIT = 48 * 1024 * 1024          # requested scoped VMEM (fits v7x 64 MiB)
_MLP_RESIDENT_BUDGET = 36 * 1024 * 1024  # budget for fully-resident MLP weights


def _round_up(x, m):
    return ((x + m - 1) // m) * m


def _pick_tile_m(M):
    # larger row tile (256) amortizes weight streaming; multiple of 16 for bf16
    if M >= 256:
        return 256
    return _round_up(M, 16)


def _pick_tile_n(N):
    # lane-dense (128-multiple) output column tile that divides padded N
    Np = _round_up(N, 128)
    for t in (512, 384, 256, 128):
        if Np % t == 0:
            return t, Np
    return Np, Np


def _layernorm_val(x, g, b, eps):
    # f32 statistics, biased variance (matches torch.nn.LayerNorm)
    mean = jnp.mean(x, axis=-1, keepdims=True)
    var = jnp.mean((x - mean) ** 2, axis=-1, keepdims=True)
    return (x - mean) * jax.lax.rsqrt(var + eps) * g + b


# --------------------------------------------------------------------------
# Pallas kernels
# --------------------------------------------------------------------------
def _patch_embed_kernel(x_ref, w_ref, b_ref, pos_ref, o_ref):
    # Linear patch projection + fused positional-embedding add.
    y = jnp.dot(x_ref[0].astype(jnp.bfloat16), w_ref[...],
                preferred_element_type=jnp.float32)
    o_ref[0] = y + b_ref[...] + pos_ref[...]


def _ln_linear_kernel(x_ref, g_ref, beta_ref, w_ref, b_ref, o_ref, *, eps):
    xn = _layernorm_val(x_ref[...].astype(jnp.float32), g_ref[...], beta_ref[...], eps)
    y = jnp.dot(xn.astype(jnp.bfloat16), w_ref[...],
                preferred_element_type=jnp.float32) + b_ref[...]
    o_ref[...] = y.astype(o_ref.dtype)


def _attn_block_kernel(*refs, num_heads, scale, true_len, eps, with_pos):
    # Fused: (+pos) + LN1 + QKV proj + multi-head softmax(QK^T)V + proj + residual
    if with_pos:
        (x_ref, pos_ref, g_ref, beta_ref, wqkv_ref, bqkv_ref,
         wproj_ref, bproj_ref, o_ref, attn_ref) = refs
    else:
        (x_ref, g_ref, beta_ref, wqkv_ref, bqkv_ref,
         wproj_ref, bproj_ref, o_ref, attn_ref) = refs
        pos_ref = None

    x = x_ref[0].astype(jnp.float32)                # (Lp, D)
    if with_pos:
        x = x + pos_ref[0]
    L, D = x.shape
    Dh = D // num_heads

    xn = _layernorm_val(x, g_ref[...], beta_ref[...], eps)
    qkv = jnp.dot(xn.astype(jnp.bfloat16), wqkv_ref[...],
                  preferred_element_type=jnp.float32) + bqkv_ref[...]   # (Lp, 3D)

    if true_len < L:                                # mask padded key positions
        key_ids = jax.lax.broadcasted_iota(jnp.int32, (L, L), 1)
        mask_bias = jnp.where(key_ids < true_len, 0.0, -1e30).astype(jnp.float32)
    else:
        mask_bias = None

    # TODO(synk): per-head 64-lane column slices force masked stores at
    # production Dh; process head pairs / (H, L, Dh) layout would fix it.
    for h in range(num_heads):                      # static in-kernel head loop
        q = qkv[:, h * Dh:(h + 1) * Dh] * scale     # fold 1/sqrt(Dh) into q
        k = qkv[:, D + h * Dh:D + (h + 1) * Dh]
        v = qkv[:, 2 * D + h * Dh:2 * D + (h + 1) * Dh]
        s = jax.lax.dot_general(
            q.astype(jnp.bfloat16), k.astype(jnp.bfloat16),
            (((1,), (1,)), ((), ())),
            preferred_element_type=jnp.float32)
        if mask_bias is not None:
            s = s + mask_bias
        s = s - jnp.max(s, axis=-1, keepdims=True)
        p = jnp.exp(s)
        p = p / jnp.sum(p, axis=-1, keepdims=True)  # exact softmax normalization
        attn_ref[:, h * Dh:(h + 1) * Dh] = jnp.dot(
            p.astype(jnp.bfloat16), v.astype(jnp.bfloat16),
            preferred_element_type=jnp.float32)

    out = jnp.dot(attn_ref[...].astype(jnp.bfloat16), wproj_ref[...],
                  preferred_element_type=jnp.float32) + bproj_ref[...]
    o_ref[0] = (x + out).astype(o_ref.dtype)        # residual fused in epilogue


def _mlp_resident_kernel(x_ref, g_ref, bln_ref, w1_ref, b1_ref, w2_ref, b2_ref,
                         o_ref, *, eps):
    # Fully-resident hidden dim: W1/W2 fetched once per kernel call.
    x = x_ref[...].astype(jnp.float32)
    xn = _layernorm_val(x, g_ref[...], bln_ref[...], eps)
    hid = jnp.dot(xn.astype(jnp.bfloat16), w1_ref[...],
                  preferred_element_type=jnp.float32) + b1_ref[...]
    hid = jax.nn.gelu(hid, approximate=False)       # exact erf GELU
    y = jnp.dot(hid.astype(jnp.bfloat16), w2_ref[...],
                preferred_element_type=jnp.float32) + b2_ref[...]
    o_ref[...] = (x + y).astype(o_ref.dtype)


def _mlp_tiled_kernel(x_ref, g_ref, bln_ref, w1_ref, b1_ref, w2_ref, b2_ref,
                      o_ref, xn_ref, acc_ref, *, eps):
    # Tiled reduction over the hidden dim (only for configs too large for the
    # resident path).  Hidden activation never touches HBM.
    hidx = pl.program_id(1)

    @pl.when(hidx == 0)
    def _():
        xn_ref[...] = _layernorm_val(x_ref[...].astype(jnp.float32),
                                     g_ref[...], bln_ref[...], eps)
        acc_ref[...] = jnp.zeros_like(acc_ref)

    hid = jnp.dot(xn_ref[...].astype(jnp.bfloat16), w1_ref[...],
                  preferred_element_type=jnp.float32) + b1_ref[...]
    hid = jax.nn.gelu(hid, approximate=False)
    acc_ref[...] += jnp.dot(hid.astype(jnp.bfloat16), w2_ref[...],
                            preferred_element_type=jnp.float32)

    @pl.when(hidx == pl.num_programs(1) - 1)
    def _():
        o_ref[...] = (acc_ref[...] + b2_ref[...]
                      + x_ref[...].astype(jnp.float32)).astype(o_ref.dtype)


# --------------------------------------------------------------------------
# Pallas wrappers
# --------------------------------------------------------------------------
def patch_embed(xp, w, b, pos):
    """tok = xp @ w + b + pos  (pos add fused).  xp: (B, L, K) f32, w bf16."""
    B, L, K = xp.shape
    D = w.shape[1]
    tn, Np = _pick_tile_n(D)

    wq, bb = w, b.astype(jnp.float32).reshape(1, D)
    posb = pos.astype(jnp.float32)
    if Np != D:
        wq = jnp.pad(wq, ((0, 0), (0, Np - D)))
        bb = jnp.pad(bb, ((0, 0), (0, Np - D)))
        posb = jnp.pad(posb, ((0, 0), (0, Np - D)))

    out = pl.pallas_call(
        _patch_embed_kernel,
        out_shape=jax.ShapeDtypeStruct((B, L, Np), jnp.float32),
        grid=(Np // tn, B),                               # batch innermost: W resident
        in_specs=[
            pl.BlockSpec((1, L, K), lambda j, bi: (bi, 0, 0)),
            pl.BlockSpec((K, tn), lambda j, bi: (0, j)),
            pl.BlockSpec((1, tn), lambda j, bi: (0, j)),
            pl.BlockSpec((L, tn), lambda j, bi: (0, j)),
        ],
        out_specs=pl.BlockSpec((1, L, tn), lambda j, bi: (bi, 0, j)),
        compiler_params=pltpu.CompilerParams(
            dimension_semantics=("parallel", "parallel"),
            vmem_limit_bytes=_VMEM_LIMIT),
    )(xp.astype(jnp.float32), wq, bb, posb)
    return out[:, :, :D]


def fused_ln_linear(x, w, b, ln_w, ln_b, eps, out_dtype=jnp.bfloat16):
    """y = LN(x) @ w + b, tiled over (M, N).  Grid order chosen so the larger
    HBM stream (weights or activations) is not re-fetched per tile."""
    orig_shape = x.shape
    K = orig_shape[-1]
    M = int(np.prod(orig_shape[:-1]))
    N = w.shape[1]

    tm = _pick_tile_m(M)
    Mp = _round_up(M, tm)
    tn, Np = _pick_tile_n(N)

    x2 = x.reshape(M, K)
    if Mp != M:
        x2 = jnp.pad(x2, ((0, Mp - M), (0, 0)))
    wq = w
    bb = b.astype(jnp.float32).reshape(1, N)
    if Np != N:
        wq = jnp.pad(wq, ((0, 0), (0, Np - N)))
        bb = jnp.pad(bb, ((0, 0), (0, Np - N)))
    gv = ln_w.astype(jnp.float32).reshape(1, K)
    bv = ln_b.astype(jnp.float32).reshape(1, K)

    Mi, Nj = Mp // tm, Np // tn
    w_bytes = int(wq.size) * wq.dtype.itemsize
    x_bytes = int(x2.size) * x2.dtype.itemsize

    kernel = functools.partial(_ln_linear_kernel, eps=eps)
    cparams = pltpu.CompilerParams(dimension_semantics=("parallel", "parallel"),
                                   vmem_limit_bytes=_VMEM_LIMIT)

    if Nj * x_bytes + w_bytes <= Mi * w_bytes + x_bytes:
        # weights dominant: M innermost -> each W tile fetched once overall
        grid = (Nj, Mi)
        in_specs = [pl.BlockSpec((tm, K), lambda j, i: (i, 0)),
                    pl.BlockSpec((1, K), lambda j, i: (0, 0)),
                    pl.BlockSpec((1, K), lambda j, i: (0, 0)),
                    pl.BlockSpec((K, tn), lambda j, i: (0, j)),
                    pl.BlockSpec((1, tn), lambda j, i: (0, j))]
        out_spec = pl.BlockSpec((tm, tn), lambda j, i: (i, j))
    else:
        # activations dominant: N innermost -> each x tile fetched once overall
        grid = (Mi, Nj)
        in_specs = [pl.BlockSpec((tm, K), lambda i, j: (i, 0)),
                    pl.BlockSpec((1, K), lambda i, j: (0, 0)),
                    pl.BlockSpec((1, K), lambda i, j: (0, 0)),
                    pl.BlockSpec((K, tn), lambda i, j: (0, j)),
                    pl.BlockSpec((1, tn), lambda i, j: (0, j))]
        out_spec = pl.BlockSpec((tm, tn), lambda i, j: (i, j))

    out = pl.pallas_call(
        kernel,
        out_shape=jax.ShapeDtypeStruct((Mp, Np), out_dtype),
        grid=grid, in_specs=in_specs, out_specs=out_spec,
        compiler_params=cparams,
    )(x2, gv, bv, wq, bb)
    return out[:M, :N].reshape(orig_shape[:-1] + (N,))


def attention_block(x, p, num_heads, true_len, eps, pos=None):
    """x(+pos) + proj(attn(LN1(x+pos))) — fully fused, one grid step per batch.
    x is bf16 (B, Lp, D); padded key positions (>= true_len) are masked."""
    # TODO(synk): grid is (B,) only; small/odd B underuses v7x's second TC.
    B, Lp, D = x.shape
    Dh = D // num_heads
    with_pos = pos is not None
    kernel = functools.partial(_attn_block_kernel, num_heads=num_heads,
                               scale=float(Dh) ** -0.5, true_len=true_len,
                               eps=eps, with_pos=with_pos)
    const2 = lambda b: (0, 0)

    in_specs = [pl.BlockSpec((1, Lp, D), lambda b: (b, 0, 0))]
    args = [x]
    if with_pos:
        in_specs.append(pl.BlockSpec((1, Lp, D), lambda b: (0, 0, 0)))
        args.append(pos.astype(jnp.float32))
    in_specs += [
        pl.BlockSpec((1, D), const2),
        pl.BlockSpec((1, D), const2),
        pl.BlockSpec((D, 3 * D), const2),
        pl.BlockSpec((1, 3 * D), const2),
        pl.BlockSpec((D, D), const2),
        pl.BlockSpec((1, D), const2),
    ]
    args += [p["norm1_w"].reshape(1, D), p["norm1_b"].reshape(1, D),
             p["qkv_w"], p["qkv_b"].reshape(1, 3 * D),
             p["proj_w"], p["proj_b"].reshape(1, D)]

    return pl.pallas_call(
        kernel,
        out_shape=jax.ShapeDtypeStruct((B, Lp, D), jnp.bfloat16),
        grid=(B,),
        in_specs=in_specs,
        out_specs=pl.BlockSpec((1, Lp, D), lambda b: (b, 0, 0)),
        scratch_shapes=[pltpu.VMEM((Lp, D), jnp.float32)],
        compiler_params=pltpu.CompilerParams(
            dimension_semantics=("parallel",),
            vmem_limit_bytes=_VMEM_LIMIT),
    )(*args)


def mlp_block(x, p, eps):
    """x + fc2(gelu(fc1(LN2(x)))) — hidden activation stays in VMEM."""
    B, Lp, D = x.shape
    H = p["fc1_w"].shape[1]
    M = B * Lp

    tm = _pick_tile_m(M)
    Mp = _round_up(M, tm)
    Hp = _round_up(H, 128)

    x2 = x.reshape(M, D)
    if Mp != M:
        x2 = jnp.pad(x2, ((0, Mp - M), (0, 0)))
    w1, w2 = p["fc1_w"], p["fc2_w"]
    b1 = p["fc1_b"].astype(jnp.float32).reshape(1, H)
    if Hp != H:
        w1 = jnp.pad(w1, ((0, 0), (0, Hp - H)))
        b1 = jnp.pad(b1, ((0, 0), (0, Hp - H)))
        w2 = jnp.pad(w2, ((0, Hp - H), (0, 0)))
    b2 = p["fc2_b"].astype(jnp.float32).reshape(1, D)
    g = p["norm2_w"].reshape(1, D)
    bln = p["norm2_b"].reshape(1, D)

    weight_bytes = (int(w1.size) + int(w2.size)) * 2          # bf16
    resident_bytes = (2 * weight_bytes            # double-buffered W1 + W2
                      + 2 * 2 * tm * D * 2 * 2    # x/out blocks, double-buffered bf16
                      + 4 * tm * Hp               # f32 hidden intermediate
                      + 8 * tm * D)               # f32 xn / residual temporaries

    if resident_bytes <= _MLP_RESIDENT_BUDGET:
        # Hidden dim fully resident: W1/W2 block indices constant -> one DMA each.
        out = pl.pallas_call(
            functools.partial(_mlp_resident_kernel, eps=eps),
            out_shape=jax.ShapeDtypeStruct((Mp, D), jnp.bfloat16),
            grid=(Mp // tm,),
            in_specs=[
                pl.BlockSpec((tm, D), lambda i: (i, 0)),
                pl.BlockSpec((1, D), lambda i: (0, 0)),
                pl.BlockSpec((1, D), lambda i: (0, 0)),
                pl.BlockSpec((D, Hp), lambda i: (0, 0)),
                pl.BlockSpec((1, Hp), lambda i: (0, 0)),
                pl.BlockSpec((Hp, D), lambda i: (0, 0)),
                pl.BlockSpec((1, D), lambda i: (0, 0)),
            ],
            out_specs=pl.BlockSpec((tm, D), lambda i: (i, 0)),
            compiler_params=pltpu.CompilerParams(
                dimension_semantics=("parallel",),
                vmem_limit_bytes=_VMEM_LIMIT),
        )(x2, g, bln, w1, b1, w2, b2)
    else:
        th = min(Hp, 2048)
        Hp2 = _round_up(Hp, th)
        if Hp2 != Hp:
            w1 = jnp.pad(w1, ((0, 0), (0, Hp2 - Hp)))
            b1 = jnp.pad(b1, ((0, 0), (0, Hp2 - Hp)))
            w2 = jnp.pad(w2, ((0, Hp2 - Hp), (0, 0)))
            Hp = Hp2
        out = pl.pallas_call(
            functools.partial(_mlp_tiled_kernel, eps=eps),
            out_shape=jax.ShapeDtypeStruct((Mp, D), jnp.bfloat16),
            grid=(Mp // tm, Hp // th),                 # reduction axis last
            in_specs=[
                pl.BlockSpec((tm, D), lambda i, h: (i, 0)),
                pl.BlockSpec((1, D), lambda i, h: (0, 0)),
                pl.BlockSpec((1, D), lambda i, h: (0, 0)),
                pl.BlockSpec((D, th), lambda i, h: (0, h)),
                pl.BlockSpec((1, th), lambda i, h: (0, h)),
                pl.BlockSpec((th, D), lambda i, h: (h, 0)),
                pl.BlockSpec((1, D), lambda i, h: (0, 0)),
            ],
            out_specs=pl.BlockSpec((tm, D), lambda i, h: (i, 0)),
            scratch_shapes=[pltpu.VMEM((tm, D), jnp.float32),   # normalized x
                            pltpu.VMEM((tm, D), jnp.float32)],  # f32 accumulator
            compiler_params=pltpu.CompilerParams(
                dimension_semantics=("parallel", "arbitrary"),
                vmem_limit_bytes=_VMEM_LIMIT),
        )(x2, g, bln, w1, b1, w2, b2)
    return out[:M].reshape(B, Lp, D)


# --------------------------------------------------------------------------
# Parameter initialization (weights stored in bf16 once, biases/LN in f32)
# --------------------------------------------------------------------------
def xavier_uniform(key, fan_in, fan_out, shape):
    bound = float(np.sqrt(6.0 / (fan_in + fan_out)))
    return jax.random.uniform(key, shape, jnp.float32, -bound, bound)


def make_block_params(key, dim, mlp_ratio):
    ks = jax.random.split(key, 4)
    hidden = int(dim * mlp_ratio)
    return dict(
        norm1_w=jnp.ones((dim,), jnp.float32), norm1_b=jnp.zeros((dim,), jnp.float32),
        qkv_w=xavier_uniform(ks[0], dim, 3 * dim, (dim, 3 * dim)).astype(jnp.bfloat16),
        qkv_b=jnp.zeros((3 * dim,), jnp.float32),
        proj_w=xavier_uniform(ks[1], dim, dim, (dim, dim)).astype(jnp.bfloat16),
        proj_b=jnp.zeros((dim,), jnp.float32),
        norm2_w=jnp.ones((dim,), jnp.float32), norm2_b=jnp.zeros((dim,), jnp.float32),
        fc1_w=xavier_uniform(ks[2], dim, hidden, (dim, hidden)).astype(jnp.bfloat16),
        fc1_b=jnp.zeros((hidden,), jnp.float32),
        fc2_w=xavier_uniform(ks[3], hidden, dim, (hidden, dim)).astype(jnp.bfloat16),
        fc2_b=jnp.zeros((dim,), jnp.float32),
    )


def make_params(key, cfg):
    C, p = cfg["in_chans"], cfg["patch_size"]
    D, Dd = cfg["embed_dim"], cfg["dec_embed_dim"]
    grid_size = cfg["img_size"] // p

    keys = jax.random.split(key, 8 + cfg["depth"] + cfg["dec_depth"])
    ki = iter(keys)

    params = {}
    params["patch_w"] = xavier_uniform(next(ki), C * p * p, D,
                                       (C * p * p, D)).astype(jnp.bfloat16)
    params["patch_b"] = jnp.zeros((D,), jnp.float32)
    params["cls_token"] = 0.02 * jax.random.normal(next(ki), (1, 1, D), jnp.float32)
    params["mask_token"] = 0.02 * jax.random.normal(next(ki), (1, 1, Dd), jnp.float32)
    params["pos_embed"] = jnp.asarray(
        get_2d_sincos_pos_embed(D, grid_size, cls_token=True))[None]
    params["dec_pos_embed"] = jnp.asarray(
        get_2d_sincos_pos_embed(Dd, grid_size, cls_token=True))[None]
    params["enc_blocks"] = [make_block_params(next(ki), D, cfg["mlp_ratio"])
                            for _ in range(cfg["depth"])]
    params["norm_w"] = jnp.ones((D,), jnp.float32)
    params["norm_b"] = jnp.zeros((D,), jnp.float32)
    params["dec_embed_w"] = xavier_uniform(next(ki), D, Dd, (D, Dd)).astype(jnp.bfloat16)
    params["dec_embed_b"] = jnp.zeros((Dd,), jnp.float32)
    params["dec_blocks"] = [make_block_params(next(ki), Dd, cfg["mlp_ratio"])
                            for _ in range(cfg["dec_depth"])]
    params["dec_norm_w"] = jnp.ones((Dd,), jnp.float32)
    params["dec_norm_b"] = jnp.zeros((Dd,), jnp.float32)
    out_dim = p * p * C
    params["dec_pred_w"] = xavier_uniform(next(ki), Dd, out_dim,
                                          (Dd, out_dim)).astype(jnp.bfloat16)
    params["dec_pred_b"] = jnp.zeros((out_dim,), jnp.float32)
    return params


# --------------------------------------------------------------------------
# Full forward: (pred, mask)
# --------------------------------------------------------------------------
def mae_forward(params, x, mask_ratio, mask_key, cfg):
    B, C, H, W = x.shape
    p = cfg["patch_size"]
    gh = H // p
    L = gh * gh
    D = cfg["embed_dim"]
    Dd = cfg["dec_embed_dim"]
    eps = cfg["ln_eps"]

    # --- patch embed (Conv2d stride=p kernel=p == patchify + Linear), pos fused ---
    xp = x.reshape(B, C, gh, p, gh, p).transpose(0, 2, 4, 1, 3, 5).reshape(B, L, C * p * p)
    tok = patch_embed(xp, params["patch_w"], params["patch_b"],
                      params["pos_embed"][0, 1:, :])                  # (B, L, D) f32

    # --- random masking (argsort gather: plain JAX glue) ---
    # TODO(synk): data-dependent shuffle/gather has no clean rectangular-BlockSpec form.
    len_keep = int(L * (1 - mask_ratio))
    noise = jax.random.uniform(mask_key, (B, L), jnp.float32)
    ids_shuffle = jnp.argsort(noise, axis=1)
    ids_restore = jnp.argsort(ids_shuffle, axis=1)
    ids_keep = ids_shuffle[:, :len_keep]
    x_masked = jnp.take_along_axis(tok, ids_keep[:, :, None], axis=1)
    mask = jnp.ones((B, L), jnp.float32).at[:, :len_keep].set(0.0)
    mask = jnp.take_along_axis(mask, ids_restore, axis=1)

    # --- encoder (pad sequence once, carry activations in bf16) ---
    cls = params["cls_token"] + params["pos_embed"][:, :1, :]
    cls = jnp.broadcast_to(cls, (B, 1, D))
    xe = jnp.concatenate([cls, x_masked], axis=1)                     # (B, Le, D) f32
    Le = xe.shape[1]
    Lpe = _round_up(Le, 8)
    if Lpe != Le:
        xe = jnp.pad(xe, ((0, 0), (0, Lpe - Le), (0, 0)))
    xe = xe.astype(jnp.bfloat16)
    for blk in params["enc_blocks"]:
        xe = attention_block(xe, blk, cfg["num_heads"], Le, eps)
        xe = mlp_block(xe, blk, eps)

    # encoder final LayerNorm fused into the decoder_embed projection
    xd = fused_ln_linear(xe, params["dec_embed_w"], params["dec_embed_b"],
                         params["norm_w"], params["norm_b"], eps)     # (B, Lpe, Dd) bf16
    xd = xd[:, :Le, :]                                                # drop seq padding

    # --- decoder token assembly (plain JAX gather) ---
    n_mask = L + 1 - Le
    mask_tokens = jnp.broadcast_to(params["mask_token"].astype(jnp.bfloat16),
                                   (B, n_mask, Dd))
    x_ = jnp.concatenate([xd[:, 1:, :], mask_tokens], axis=1)
    x_ = jnp.take_along_axis(x_, ids_restore[:, :, None], axis=1)
    xd = jnp.concatenate([xd[:, :1, :], x_], axis=1)                  # (B, L+1, Dd) bf16
    Ld = L + 1
    Lpd = _round_up(Ld, 8)
    if Lpd != Ld:
        xd = jnp.pad(xd, ((0, 0), (0, Lpd - Ld), (0, 0)))
    dec_pos = params["dec_pos_embed"]
    if Lpd != Ld:
        dec_pos = jnp.pad(dec_pos, ((0, 0), (0, Lpd - Ld), (0, 0)))

    for bi, blk in enumerate(params["dec_blocks"]):
        pos = dec_pos if bi == 0 else None     # decoder pos add fused into 1st block
        xd = attention_block(xd, blk, cfg["dec_num_heads"], Ld, eps, pos=pos)
        xd = mlp_block(xd, blk, eps)

    # decoder final LayerNorm fused into the prediction head (f32 output)
    pred = fused_ln_linear(xd, params["dec_pred_w"], params["dec_pred_b"],
                           params["dec_norm_w"], params["dec_norm_b"], eps,
                           out_dtype=jnp.float32)
    pred = pred[:, 1:Ld, :]                                           # drop cls + padding
    return pred, mask


# --------------------------------------------------------------------------
if __name__ == "__main__":
    cfg = dict(
        img_size=16, patch_size=8, in_chans=3,
        embed_dim=32, depth=2, num_heads=4,
        dec_embed_dim=16, dec_depth=1, dec_num_heads=4,
        mlp_ratio=4.0, ln_eps=1e-6,
    )

    root_key = jax.random.PRNGKey(0)
    param_key, data_key, mask_key = jax.random.split(root_key, 3)

    params = make_params(param_key, cfg)
    x = jax.random.normal(data_key, (2, cfg["in_chans"], cfg["img_size"], cfg["img_size"]),
                          jnp.float32)
    mask_ratio = 0.5   # L=4 patches -> keep 2 per image

    pred, mask = mae_forward(params, x, mask_ratio, mask_key, cfg)
    jax.block_until_ready((pred, mask))

    L = (cfg["img_size"] // cfg["patch_size"]) ** 2
    out_dim = cfg["patch_size"] ** 2 * cfg["in_chans"]
    assert pred.shape == (2, L, out_dim), pred.shape
    assert mask.shape == (2, L), mask.shape
    assert bool(jnp.all(jnp.isfinite(pred)))

    print("KERNEL_OK")
</pallas_src>

<mosaic_0001>
module attributes {stable_mosaic.version = 11 : i64} {
  func.func @_patch_embed_kernel(%arg0: i32, %arg1: i32, %arg2: memref<1x4x192xf32, #tpu.memory_space<vmem>>, %arg3: memref<192x128xbf16, #tpu.memory_space<vmem>>, %arg4: memref<1x128xf32, #tpu.memory_space<vmem>>, %arg5: memref<4x128xf32, #tpu.memory_space<vmem>>, %arg6: memref<1x4x128xf32, #tpu.memory_space<vmem>>) attributes {dimension_semantics = [#tpu.dimension_semantics<parallel>, #tpu.dimension_semantics<parallel>], iteration_bounds = array<i64: 1, 2>, scalar_prefetch = 0 : i64, scratch_operands = 0 : i64, tpu.core_type = #tpu.core_type<tc>, window_params = [{transform_indices = @transform_0, window_bounds = array<i64: 1, 4, 192>}, {transform_indices = @transform_1, window_bounds = array<i64: 192, 128>}, {transform_indices = @transform_2, window_bounds = array<i64: 1, 128>}, {transform_indices = @transform_3, window_bounds = array<i64: 4, 128>}, {transform_indices = @transform_4, window_bounds = array<i64: 1, 4, 128>}]} {
    %c0 = arith.constant 0 : index
    %c0_0 = arith.constant 0 : index
    %c0_1 = arith.constant 0 : index
    %0 = vector.load %arg2[%c0, %c0_0, %c0_1] : memref<1x4x192xf32, #tpu.memory_space<vmem>>, vector<1x4x192xf32>
    %1 = vector.shape_cast %0 : vector<1x4x192xf32> to vector<4x192xf32>
    %2 = arith.truncf %1 : vector<4x192xf32> to vector<4x192xbf16>
    %c0_2 = arith.constant 0 : index
    %c0_3 = arith.constant 0 : index
    %3 = vector.load %arg3[%c0_2, %c0_3] : memref<192x128xbf16, #tpu.memory_space<vmem>>, vector<192x128xbf16>
    %cst = arith.constant dense<0.000000e+00> : vector<4x128xf32>
    %4 = tpu.matmul %2, %3, %cst {dimension_numbers = #tpu.dot_dimension_numbers<[1], [0], [0], [1], [0, 0, 1, 1], [], []>} : vector<4x192xbf16>, vector<192x128xbf16>, vector<4x128xf32> -> vector<4x128xf32>
    %c0_4 = arith.constant 0 : index
    %c0_5 = arith.constant 0 : index
    %5 = vector.load %arg4[%c0_4, %c0_5] : memref<1x128xf32, #tpu.memory_space<vmem>>, vector<1x128xf32>
    %6 = vector.broadcast %5 : vector<1x128xf32> to vector<4x128xf32>
    %7 = arith.addf %4, %6 : vector<4x128xf32>
    %c0_6 = arith.constant 0 : index
    %c0_7 = arith.constant 0 : index
    %8 = vector.load %arg5[%c0_6, %c0_7] : memref<4x128xf32, #tpu.memory_space<vmem>>, vector<4x128xf32>
    %9 = arith.addf %7, %8 : vector<4x128xf32>
    %c0_8 = arith.constant 0 : index
    %c0_9 = arith.constant 0 : index
    %c0_10 = arith.constant 0 : index
    %10 = vector.load %arg6[%c0_8, %c0_9, %c0_10] : memref<1x4x128xf32, #tpu.memory_space<vmem>>, vector<1x4x128xf32>
    %11 = vector.shape_cast %10 : vector<1x4x128xf32> to vector<4x128xf32>
    %12 = vector.shape_cast %9 : vector<4x128xf32> to vector<1x4x128xf32>
    tpu.vector_store %arg6[%c0_8, %c0_9, %c0_10], %12 {strides = array<i32>} : memref<1x4x128xf32, #tpu.memory_space<vmem>>, vector<1x4x128xf32>,
    return
  }
  func.func @transform_0(%arg0: i32, %arg1: i32) -> (i32, i32, i32) {
    %c0_i32 = arith.constant 0 : i32
    %c0_i32_0 = arith.constant 0 : i32
    %c0_i32_1 = arith.constant 0 : i32
    return %arg1, %c0_i32, %c0_i32_0 : i32, i32, i32
  }
  func.func @transform_1(%arg0: i32, %arg1: i32) -> (i32, i32) {
    %c0_i32 = arith.constant 0 : i32
    %c0_i32_0 = arith.constant 0 : i32
    return %c0_i32, %arg0 : i32, i32
  }
  func.func @transform_2(%arg0: i32, %arg1: i32) -> (i32, i32) {
    %c0_i32 = arith.constant 0 : i32
    %c0_i32_0 = arith.constant 0 : i32
    return %c0_i32, %arg0 : i32, i32
  }
  func.func @transform_3(%arg0: i32, %arg1: i32) -> (i32, i32) {
    %c0_i32 = arith.constant 0 : i32
    %c0_i32_0 = arith.constant 0 : i32
    return %c0_i32, %arg0 : i32, i32
  }
  func.func @transform_4(%arg0: i32, %arg1: i32) -> (i32, i32, i32) {
    %c0_i32 = arith.constant 0 : i32
    %c0_i32_0 = arith.constant 0 : i32
    return %arg1, %c0_i32, %arg0 : i32, i32, i32
  }
}

</mosaic_0001>

<llo_original>
// kernel: tpu_custom_call.1
$region0: #{tpu_custom_call.1}
  #allocation0 [shape = 'u32[]', space=smem, size = 0x4, offset = 0x4, fixed_abs, tag = 'smem constant byte address 0x4 - core index']
  #allocation1 [shape = 'u32[144,128]{1,0:T(1,128)}', space=vmem, size = 0x12000, scoped, tag = 'internal scratch']
  %s0 = inlined_call_operand.hbm [shape: f32[2,4,192], index: 0, kind: input, shape index: {}]
  %s1 = inlined_call_operand.hbm [shape: bf16[192,128], index: 1, kind: input, shape index: {}]
  %s2 = inlined_call_operand.vmem [shape: f32[1,128], index: 2, kind: input, shape index: {}]
  %s3 = inlined_call_operand.vmem [shape: f32[4,128], index: 3, kind: input, shape index: {}]
  %s4 = inlined_call_operand.hbm [shape: f32[2,4,128], index: 4, kind: output, shape index: {}]
  %s5 = sld [smem:[#allocation0]]
  $region57: #{tpu_custom_call.1} parent=0
    _
  %s7 = ssub.s32 1, %s5
  %s8 = scalar_select 0, %s7, %s5
  $region1: #{tpu_custom_call.1} parent=0
    #allocation2 [shape = 'u8[8192]{0}', space=vmem, size = 0x2000, scoped, tag = 'input window, operand 0']
    #allocation3 [shape = 's32[2]{0}', space=sflag, size = 0x8, scoped, tag = 'scoped memory for tpu_custom_call.1']
    #allocation4 [shape = 's32[2]{0}', space=sflag, size = 0x8, scoped, tag = 'scoped memory for tpu_custom_call.1']
    #allocation5 [shape = 'u8[49152]{0}', space=vmem, size = 0xc000, scoped, tag = 'input window, operand 1, single buffered']
    #allocation6 [shape = 's32[1]{0}', space=sflag, size = 0x4, scoped, tag = 'scoped memory for tpu_custom_call.1']
    #allocation7 [shape = 'u8[4096]{0}', space=vmem, size = 0x1000, scoped, tag = 'output window, operand 0']
    %9 = vsyncpa [#allocation3], 0
    %s10 = scalar_lea.sflag [#allocation3], 1
    %11 = vsyncpa %s10, 0
    %12 = vsyncpa [#allocation6], 0
    %13 = vsyncpa [#allocation4], 0
    %s14 = scalar_lea.sflag [#allocation4], 1
    %15 = vsyncpa %s14, 0
    loop: start=0, step=1, limit=4
    $region2: #{tpu_custom_call.1} parent=1 // loop_pre_header
      _
    $region3: #{tpu_custom_call.1} parent=1 // loop_header
      %s17 = sphi 0, %s21
      %p18 = scmp.ge.s32.totalorder %s17, 4
      %s24 = sphi 0, %s36
      %s25 = sphi 0, %s32
      %s26 = sphi 0, %s24
      %s27 = sphi 0, %s25
      %s28 = sphi 0, %s26
      %s29 = sphi 0, %s27
      %s39 = sphi 0, %s41
      %s42 = sphi 0, %s39
      %s43 = sphi 0, %s42
      %s59 = sphi 0, %s43
      %s65 = sphi 0, %s67
      %s68 = sphi 0, %s65
      %s69 = sphi 0, %s68
      %s85 = sphi 0, %s69
      %s91 = sphi 0, %s93
      %s94 = sphi 0, %s91
      %s95 = sphi 0, %s94
      %s111 = sphi 0, %s95
      %s117 = sphi 0, %s119
      %s120 = sphi 0, %s117
      %s121 = sphi 0, %s120
      %s137 = sphi 0, %s121
      %s145 = sphi 0, %s147
      %s148 = sphi 0, %s145
      %s149 = sphi 0, %s148
      %s165 = sphi 0, %s149
    $region4: #{tpu_custom_call.1} parent=1 // loop_header_branch
      %20 = sbr.rel (%p18) target = $region8
    $region5: #{tpu_custom_call.1} parent=1 // loop_body
      %s22 = ssub.s32 %s17, 1
      %s23 = ssub.s32 %s17, 2
      %s30 = sadd.s32 1, %s25
      %p31 = scmp.ge.s32.totalorder %s30, 2
      %s32 = scalar_select %p31, 0, %s30
      %s33 = sadd.s32 1, %s24
      %s34 = scalar_select %p31, %s33, %s24
      %p35 = scmp.ge.s32.totalorder %s34, 1
      %s36 = scalar_select %p35, 0, %s34
      %s37 = ssub.s32 %s25, %s32
      %p38 = scmp.eq.s32.totalorder %s37, 0
      %s40 = sadd.s32 %s39, 1
      %s41 = scalar_select %p38, %s39, %s40
      %p44 = pneg %p38
      %p45 = scmp.eq.s32.totalorder %s17, 1
      %p46 = por %p44, %p45
      %p47 = scmp.ne.s32.totalorder %s39, %s42
      %p48 = scmp.eq.s32.totalorder %s17, 0
      %p49 = por %p47, %p48
      %p50 = scmp.ne.s32.totalorder %s39, %s42
      %p51 = scmp.eq.s32.totalorder %s22, 1
      %p52 = por %p50, %p51
      %p53 = scmp.ne.s32.totalorder %s42, %s43
      %p54 = scmp.eq.s32.totalorder %s22, 0
      %p55 = por %p53, %p54
      %p56 = scmp.ne.s32.totalorder %s42, %s43
      %p57 = scmp.eq.s32.totalorder %s23, 1
      %p58 = por %p56, %p57
      %p60 = scmp.ne.s32.totalorder %s43, %s59
      %p61 = scmp.eq.s32.totalorder %s23, 0
      %p62 = por %p60, %p61
      %s63 = ssub.s32 %s24, %s36
      %p64 = scmp.eq.s32.totalorder %s63, 0
      %s66 = sadd.s32 %s65, 1
      %s67 = scalar_select %p64, %s65, %s66
      %p70 = pneg %p64
      %p71 = scmp.eq.s32.totalorder %s17, 1
      %p72 = por %p70, %p71
      %p73 = scmp.ne.s32.totalorder %s65, %s68
      %p74 = scmp.eq.s32.totalorder %s17, 0
      %p75 = por %p73, %p74
      %p76 = scmp.ne.s32.totalorder %s65, %s68
      %p77 = scmp.eq.s32.totalorder %s22, 1
      %p78 = por %p76, %p77
      %p79 = scmp.ne.s32.totalorder %s68, %s69
      %p80 = scmp.eq.s32.totalorder %s22, 0
      %p81 = por %p79, %p80
      %p82 = scmp.ne.s32.totalorder %s68, %s69
      %p83 = scmp.eq.s32.totalorder %s23, 1
      %p84 = por %p82, %p83
      %p86 = scmp.ne.s32.totalorder %s69, %s85
      %p87 = scmp.eq.s32.totalorder %s23, 0
      %p88 = por %p86, %p87
      %s89 = ssub.s32 %s24, %s36
      %p90 = scmp.eq.s32.totalorder %s89, 0
      %s92 = sadd.s32 %s91, 1
      %s93 = scalar_select %p90, %s91, %s92
      %p96 = pneg %p90
      %p97 = scmp.eq.s32.totalorder %s17, 1
      %p98 = por %p96, %p97
      %p99 = scmp.ne.s32.totalorder %s91, %s94
      %p100 = scmp.eq.s32.totalorder %s17, 0
      %p101 = por %p99, %p100
      %p102 = scmp.ne.s32.totalorder %s91, %s94
      %p103 = scmp.eq.s32.totalorder %s22, 1
      %p104 = por %p102, %p103
      %p105 = scmp.ne.s32.totalorder %s94, %s95
      %p106 = scmp.eq.s32.totalorder %s22, 0
      %p107 = por %p105, %p106
      %p108 = scmp.ne.s32.totalorder %s94, %s95
      %p109 = scmp.eq.s32.totalorder %s23, 1
      %p110 = por %p108, %p109
      %p112 = scmp.ne.s32.totalorder %s95, %s111
      %p113 = scmp.eq.s32.totalorder %s23, 0
      %p114 = por %p112, %p113
      %s115 = ssub.s32 %s24, %s36
      %p116 = scmp.eq.s32.totalorder %s115, 0
      %s118 = sadd.s32 %s117, 1
      %s119 = scalar_select %p116, %s117, %s118
      %p122 = pneg %p116
      %p123 = scmp.eq.s32.totalorder %s17, 1
      %p124 = por %p122, %p123
      %p125 = scmp.ne.s32.totalorder %s117, %s120
      %p126 = scmp.eq.s32.totalorder %s17, 0
      %p127 = por %p125, %p126
      %p128 = scmp.ne.s32.totalorder %s117, %s120
      %p129 = scmp.eq.s32.totalorder %s22, 1
      %p130 = por %p128, %p129
      %p131 = scmp.ne.s32.totalorder %s120, %s121
      %p132 = scmp.eq.s32.totalorder %s22, 0
      %p133 = por %p131, %p132
      %p134 = scmp.ne.s32.totalorder %s120, %s121
      %p135 = scmp.eq.s32.totalorder %s23, 1
      %p136 = por %p134, %p135
      %p138 = scmp.ne.s32.totalorder %s121, %s137
      %p139 = scmp.eq.s32.totalorder %s23, 0
      %p140 = por %p138, %p139
      %s141 = ssub.s32 %s25, %s32
      %s142 = ssub.s32 %s24, %s36
      %s143 = sor.u32 %s141, %s142
      %p144 = scmp.eq.s32.totalorder %s143, 0
      %s146 = sadd.s32 %s145, 1
      %s147 = scalar_select %p144, %s145, %s146
      %p150 = pneg %p144
      %p151 = scmp.eq.s32.totalorder %s17, 1
      %p152 = por %p150, %p151
      %p153 = scmp.ne.s32.totalorder %s145, %s148
      %p154 = scmp.eq.s32.totalorder %s17, 0
      %p155 = por %p153, %p154
      %p156 = scmp.ne.s32.totalorder %s145, %s148
      %p157 = scmp.eq.s32.totalorder %s22, 1
      %p158 = por %p156, %p157
      %p159 = scmp.ne.s32.totalorder %s148, %s149
      %p160 = scmp.eq.s32.totalorder %s22, 0
      %p161 = por %p159, %p160
      %p162 = scmp.ne.s32.totalorder %s148, %s149
      %p163 = scmp.eq.s32.totalorder %s23, 1
      %p164 = por %p162, %p163
      %p166 = scmp.ne.s32.totalorder %s149, %s165
      %p167 = scmp.eq.s32.totalorder %s23, 0
      %p168 = por %p166, %p167
      %p169 = scmp.le.s32.totalorder 1, %s17
      %p170 = scmp.lt.s32.totalorder %s17, 3
      %p171 = pnand %p169, %p170
      %p172 = pneg %p171
      // Predicated region
      $region9: #{tpu_custom_call.1} parent=5 // pred_check
        _
      $region10: #{tpu_custom_call.1} parent=5 // pred_check_branch
        %174 = sbr.rel (%p171) target = $region12
      $region11: #{tpu_custom_call.1} parent=5 // pred_region
        %s175 = ssub.s32 %s17, 1
        // Predicated region
        $region13: #{tpu_custom_call.1} parent=11 // pred_check
          %p176 = pneg %p81
        $region14: #{tpu_custom_call.1} parent=11 // pred_check_branch
          %178 = sbr.rel (%p176) target = $region16
        $region15: #{tpu_custom_call.1} parent=11 // pred_region
          %s180 = ssub.s32 1536, 1536
          %181 = vsyncadd [#allocation6], %s180
          %s182 = smul.addr %s26, 64
          %s183 = scalar_lea.hbm %s1, %s182
          %s184 = sshll.u32 [#allocation5], 4
          %s185 = int_to_ptr.vmem [resolvable:$true] %s184
          %190 = dma.hbm_to_vmem [thread:$0]  %s183, 1536, %s185, [#allocation6], 64, 64, 4
        $region16: #{tpu_custom_call.1} parent=11 // pred_fallthru
          _
        // Predicated region
        $region17: #{tpu_custom_call.1} parent=11 // pred_check
          %p191 = pneg %p107
        $region18: #{tpu_custom_call.1} parent=11 // pred_check_branch
          %193 = sbr.rel (%p191) target = $region20
        $region19: #{tpu_custom_call.1} parent=11 // pred_region
          %p194 = scmp.lt.s32.totalorder %s26, 0
          %s195 = scalar_select %p194, %s26, 0
          %s196 = scalar_lea.vmem %s2, %s195
        $region20: #{tpu_custom_call.1} parent=11 // pred_fallthru
          _
        // Predicated region
        $region21: #{tpu_custom_call.1} parent=11 // pred_check
          %p197 = pneg %p133
        $region22: #{tpu_custom_call.1} parent=11 // pred_check_branch
          %199 = sbr.rel (%p197) target = $region24
        $region23: #{tpu_custom_call.1} parent=11 // pred_region
          %p200 = scmp.lt.s32.totalorder %s26, 0
          %s201 = scalar_select %p200, %s26, 0
          %s202 = smul.addr %s201, 4
          %s203 = scalar_lea.vmem %s3, %s202
        $region24: #{tpu_custom_call.1} parent=11 // pred_fallthru
          _
      $region12: #{tpu_custom_call.1} parent=5 // pred_fallthru
        _
      %p204 = scmp.lt.s32.totalorder %s17, 2
      // Predicated region
      $region25: #{tpu_custom_call.1} parent=5 // pred_check
        %p205 = pneg %p204
      $region26: #{tpu_custom_call.1} parent=5 // pred_check_branch
        %207 = sbr.rel (%p205) target = $region28
      $region27: #{tpu_custom_call.1} parent=5 // pred_region
        // Predicated region
        $region29: #{tpu_custom_call.1} parent=27 // pred_check
          %p208 = pneg %p49
        $region30: #{tpu_custom_call.1} parent=27 // pred_check_branch
          %210 = sbr.rel (%p208) target = $region32
        $region31: #{tpu_custom_call.1} parent=27 // pred_region
          %s211 = sand.u32 %s39, 1
          %s212 = scalar_lea.sflag [#allocation3], %s211
          %s213 = sand.u32 %s39, 1
          %s214 = smul.addr %s213, 8
          %s215 = scalar_lea.vmem [#allocation2], %s214
          %s217 = ssub.s32 128, 128
          %218 = vsyncadd %s212, %s217
          %s219 = smul.addr %s25, 2
          %s220 = smul.addr %s219, 64
          %s221 = scalar_lea.hbm %s0, %s220
          %s223 = sshll.u32 %s215, 4
          %s224 = int_to_ptr.vmem [resolvable:$true] %s223
          %226 = dma.hbm_to_vmem [thread:$0]  %s221, 128, %s224, %s212
        $region32: #{tpu_custom_call.1} parent=27 // pred_fallthru
          _
      $region28: #{tpu_custom_call.1} parent=5 // pred_fallthru
        _
      %p227 = scmp.le.s32.totalorder 1, %s17
      %p228 = scmp.lt.s32.totalorder %s17, 3
      %p229 = pnand %p227, %p228
      %p230 = pneg %p229
      // Predicated region
      $region33: #{tpu_custom_call.1} parent=5 // pred_check
        _
      $region34: #{tpu_custom_call.1} parent=5 // pred_check_branch
        %232 = sbr.rel (%p229) target = $region36
      $region35: #{tpu_custom_call.1} parent=5 // pred_region
        %s233 = ssub.s32 %s17, 1
        %s234 = sand.u32 %s42, 1
        %s235 = scalar_lea.sflag [#allocation3], %s234
        %s236 = sand.u32 %s42, 1
        %s237 = smul.addr %s236, 8
        %s238 = scalar_lea.vmem [#allocation2], %s237
        // Predicated region
        $region37: #{tpu_custom_call.1} parent=35 // pred_check
          %p239 = pneg %p55
        $region38: #{tpu_custom_call.1} parent=35 // pred_check_branch
          %241 = sbr.rel (%p239) target = $region40
        $region39: #{tpu_custom_call.1} parent=35 // pred_region
          %242 = dma.done %s235, 128
        $region40: #{tpu_custom_call.1} parent=35 // pred_fallthru
          _
        // Predicated region
        $region41: #{tpu_custom_call.1} parent=35 // pred_check
          %p243 = pneg %p81
        $region42: #{tpu_custom_call.1} parent=35 // pred_check_branch
          %245 = sbr.rel (%p243) target = $region44
        $region43: #{tpu_custom_call.1} parent=35 // pred_region
          %246 = dma.done [#allocation6], 1536
        $region44: #{tpu_custom_call.1} parent=35 // pred_fallthru
          _
        %s247 = sand.u32 %s42, 1
        %s248 = scalar_lea.sflag [#allocation3], %s247
        %s249 = sand.u32 %s42, 1
        %s250 = smul.addr %s249, 8
        %s251 = scalar_lea.vmem [#allocation2], %s250
        %p252 = pneg %p55
        %p253 = pneg %p52
        %p254 = pneg %p81
        %p255 = pneg %p78
        %p256 = scmp.lt.s32.totalorder %s26, 0
        %s257 = scalar_select %p256, %s26, 0
        %s258 = scalar_lea.vmem %s2, %s257
        %p259 = pneg %p107
        %p260 = pneg %p104
        %p261 = scmp.lt.s32.totalorder %s26, 0
        %s262 = scalar_select %p261, %s26, 0
        %s263 = smul.addr %s262, 4
        %s264 = scalar_lea.vmem %s3, %s263
        %p265 = pneg %p133
        %p266 = pneg %p130
        %p267 = pneg %p161
        %p268 = pneg %p158
        %s269 = sand.u32 %s148, 1
        %s270 = scalar_lea.sflag [#allocation4], %s269
        %s271 = sand.u32 %s148, 1
        %s272 = smul.addr %s271, 4
        %s273 = scalar_lea.vmem [#allocation7], %s272
        %p274 = scmp.lt.s32.totalorder %s26, 0
        %s275 = scalar_select %p274, %s26, 0
        %s276 = scalar_lea.vmem %s2, %s275
        %p277 = scmp.lt.s32.totalorder %s26, 0
        %s278 = scalar_select %p277, %s26, 0
        %s279 = smul.addr %s278, 4
        %s280 = scalar_lea.vmem %s3, %s279
        %v282 = vld [vmem:[%s238] sm:$0xff]
        %v284 = vcombine.high %v282, %v282
        %v286 = vpack.c.bf16 %v282, %v282
        %v287 = vpack.c.bf16 %v284, %v284
        %v288 = vld [vmem:[#allocation5] sm:$0xf]
        %v289 = vld [vmem:[#allocation5 + $0x4] sm:$0xf]
        %v290 = vld [vmem:[#allocation5 + $0x8] sm:$0xf]
        %v291 = vld [vmem:[#allocation5 + $0xc] sm:$0xf]
        %v292 = vld [vmem:[#allocation5 + $0x10] sm:$0xf]
        %v293 = vld [vmem:[#allocation5 + $0x14] sm:$0xf]
        %v294 = vld [vmem:[#allocation5 + $0x18] sm:$0xf]
        %v295 = vld [vmem:[#allocation5 + $0x1c] sm:$0xf]
        %v296 = vld [vmem:[#allocation5 + $0x20] sm:$0xf]
        %v297 = vld [vmem:[#allocation5 + $0x24] sm:$0xf]
        %v298 = vld [vmem:[#allocation5 + $0x28] sm:$0xf]
        %v299 = vld [vmem:[#allocation5 + $0x2c] sm:$0xf]
        %v300 = vld [vmem:[#allocation5 + $0x30] sm:$0xf]
        %v301 = vld [vmem:[#allocation5 + $0x34] sm:$0xf]
        %v302 = vld [vmem:[#allocation5 + $0x38] sm:$0xf]
        %v303 = vld [vmem:[#allocation5 + $0x3c] sm:$0xf]
        %v304 = vld [vmem:[#allocation5 + $0x40] sm:$0xf]
        %v305 = vld [vmem:[#allocation5 + $0x44] sm:$0xf]
        %v306 = vld [vmem:[#allocation5 + $0x48] sm:$0xf]
        %v307 = vld [vmem:[#allocation5 + $0x4c] sm:$0xf]
        %v308 = vld [vmem:[#allocation5 + $0x50] sm:$0xf]
        %v309 = vld [vmem:[#allocation5 + $0x54] sm:$0xf]
        %v310 = vld [vmem:[#allocation5 + $0x58] sm:$0xf]
        %v311 = vld [vmem:[#allocation5 + $0x5c] sm:$0xf]
        %v312 = vld [vmem:[%s276] sm:$0x1]
        %v314 = vlaneseq
        %v315 = vshrl.u32 %v314, 7
        %v316 = vsub.s32 0, %v315
        %v317 = vrot.slane %v312, %v316
        %v343 = vunpack.c.l.b16 %v288
        %v344 = vunpack.c.l.b16 %v289
        %v345 = vunpack.c.l.b16 %v290
        %v346 = vunpack.c.l.b16 %v291
        %v347 = vunpack.c.l.b16 %v292
        %v348 = vunpack.c.l.b16 %v293
        %v349 = vunpack.c.l.b16 %v294
        %v350 = vunpack.c.l.b16 %v295
        %v351 = vunpack.c.l.b16 %v296
        %v352 = vunpack.c.l.b16 %v297
        %v353 = vunpack.c.l.b16 %v298
        %v354 = vunpack.c.l.b16 %v299
        %v355 = vunpack.c.l.b16 %v300
        %v356 = vunpack.c.l.b16 %v301
        %v357 = vunpack.c.l.b16 %v302
        %v358 = vunpack.c.l.b16 %v303
        %v359 = vunpack.c.l.b16 %v304
        %v360 = vunpack.c.l.b16 %v305
        %v361 = vunpack.c.l.b16 %v306
        %v362 = vunpack.c.l.b16 %v307
        %v363 = vunpack.c.l.b16 %v308
        %v364 = vunpack.c.l.b16 %v309
        %v365 = vunpack.c.l.b16 %v310
        %v366 = vunpack.c.l.b16 %v311
        %v367 = vpack.c.b16 %v344, %v343
        %v368 = vpack.c.b16 %v346, %v345
        %v369 = vpack.c.b16 %v348, %v347
        %v370 = vpack.c.b16 %v350, %v349
        %v371 = vpack.c.b16 %v352, %v351
        %v372 = vpack.c.b16 %v354, %v353
        %v373 = vpack.c.b16 %v356, %v355
        %v374 = vpack.c.b16 %v358, %v357
        %v375 = vpack.c.b16 %v360, %v359
        %v376 = vpack.c.b16 %v362, %v361
        %v377 = vpack.c.b16 %v364, %v363
        %v378 = vpack.c.b16 %v366, %v365
        %vm391 = vcmask 523264
        %v393 = vsel %vm391, %v287, 0
        %395 = vmatprep.subr.bf16.mxu0 0
        %396 = vmatpush1.bf16.msra.mxu0 %v374
        %397 = vmatprep.subr.bf16.mxu0 0
        %398 = vmatpush1.bf16.msra.mxu0 %v373
        %399 = vmatprep.subr.bf16.mxu0 0
        %400 = vmatpush1.bf16.msra.mxu0 %v372
        %401 = vmatprep.subr.bf16.mxu0 0
        %402 = vmatpush1.bf16.msra.mxu0 %v371
        %403 = vmatprep.subr.bf16.mxu0 0
        %404 = vmatpush1.bf16.msra.mxu0 %v370
        %405 = vmatprep.subr.bf16.mxu0 0
        %406 = vmatpush1.bf16.msra.mxu0 %v369
        %407 = vmatprep.subr.bf16.mxu0 0
        %408 = vmatpush1.bf16.msra.mxu0 %v368
        %409 = vmatprep.subr.bf16.mxu0 0
        %410 = vmatpush1.bf16.msra.mxu0 %v367
        %411 = vmatprep.subr.bf16.mxu0 0
        %412 = vmatpush2.bf16.msra.mxu0 0
        %413 = vmatprep.subr.bf16.mxu0 0
        %414 = vmatpush2.bf16.msra.mxu0 0
        %415 = vmatprep.subr.bf16.mxu0 0
        %416 = vmatpush2.bf16.msra.mxu0 0
        %417 = vmatprep.subr.bf16.mxu0 0
        %418 = vmatpush2.bf16.msra.mxu0 0
        %419 = vmatprep.subr.bf16.mxu0 0
        %420 = vmatpush2.bf16.msra.mxu0 %v378
        %421 = vmatprep.subr.bf16.mxu0 0
        %422 = vmatpush2.bf16.msra.mxu0 %v377
        %423 = vmatprep.subr.bf16.mxu0 0
        %424 = vmatpush2.bf16.msra.mxu0 %v376
        %425 = vmatprep.subr.bf16.mxu0 0
        %426 = vmatpush2.bf16.msra.mxu0 %v375
        %427 = vmatprep.mubr.bf16.mxu0 %v393
        %428 = vmatmul.mubr.bf16.gmra.mxu0 %v286
        %v429 = vpop.f32.mrf.mxu0
        %v430 = vadd.f32 %v317, %v429
        %v431 = vpop.f32.mrf.mxu0
        %v432 = vpop.f32.mrf.mxu0
        %v433 = vpop.f32.mrf.mxu0
        %434 = vdwg.mxu0
        %v435 = vld [vmem:[%s280] sm:$0xf]
        %v436 = vadd.f32 %v430, %v435
        %437 = vst [vmem:[%s273] sm:$0xf] %v436
        %s438 = sand.u32 %s148, 1
        %s439 = scalar_lea.sflag [#allocation4], %s438
        %s440 = sand.u32 %s148, 1
        %s441 = smul.addr %s440, 4
        %s442 = scalar_lea.vmem [#allocation7], %s441
        // Predicated region
        $region45: #{tpu_custom_call.1} parent=35 // pred_check
          %p443 = pneg %p158
        $region46: #{tpu_custom_call.1} parent=35 // pred_check_branch
          %445 = sbr.rel (%p443) target = $region48
        $region47: #{tpu_custom_call.1} parent=35 // pred_region
          %s447 = ssub.s32 64, 64
          %448 = vsyncadd %s439, %s447
          %s449 = sadd.s32 %s26, %s27
          %s450 = smul.addr %s449, 64
          %s451 = scalar_lea.hbm %s4, %s450
          %s453 = sshll.u32 %s442, 4
          %s454 = int_to_ptr.vmem [resolvable:$true] %s453
          %456 = dma.vmem_to_hbm [thread:$0]  %s454, 64, %s451, %s439
        $region48: #{tpu_custom_call.1} parent=35 // pred_fallthru
          _
      $region36: #{tpu_custom_call.1} parent=5 // pred_fallthru
        _
      %p457 = scmp.le.s32.totalorder 2, %s17
      // Predicated region
      $region49: #{tpu_custom_call.1} parent=5 // pred_check
        %p458 = pneg %p457
      $region50: #{tpu_custom_call.1} parent=5 // pred_check_branch
        %460 = sbr.rel (%p458) target = $region52
      $region51: #{tpu_custom_call.1} parent=5 // pred_region
        %s461 = ssub.s32 %s17, 2
        // Predicated region
        $region53: #{tpu_custom_call.1} parent=51 // pred_check
          %p462 = pneg %p164
        $region54: #{tpu_custom_call.1} parent=51 // pred_check_branch
          %464 = sbr.rel (%p462) target = $region56
        $region55: #{tpu_custom_call.1} parent=51 // pred_region
          %s465 = sand.u32 %s149, 1
          %s466 = scalar_lea.sflag [#allocation4], %s465
          %s467 = sand.u32 %s149, 1
          %s468 = smul.addr %s467, 4
          %s469 = scalar_lea.vmem [#allocation7], %s468
          %470 = dma.done %s466, 64
        $region56: #{tpu_custom_call.1} parent=51 // pred_fallthru
          _
      $region52: #{tpu_custom_call.1} parent=5 // pred_fallthru
        _
    $region6: #{tpu_custom_call.1} parent=1 // loop_footer
      %s21 = sadd.s32 1, %s17
    $region7: #{tpu_custom_call.1} parent=1 // loop_footer_branch
      %16 = sbr.rel target = $region3
    $region8: #{tpu_custom_call.1} parent=1 // loop_exit
      _
    %471 = vsyncpa [#allocation3], 1
    %s472 = scalar_lea.sflag [#allocation3], 1
    %473 = vsyncpa %s472, 1
    %474 = vsyncpa [#allocation6], 1
    %475 = vsyncpa [#allocation4], 1
    %s476 = scalar_lea.sflag [#allocation4], 1
    %477 = vsyncpa %s476, 1

</llo_original>
